<compile_context>
chip_gen: v7x
topology: tpu7x:2x2x1
jax: 0.10.0
libtpu: 0.0.40
codegen_flags: <defaults>
</compile_context>

<pallas_src>
import jax
import jax.numpy as jnp
from jax import lax
from jax.experimental import pallas as pl
from jax.experimental.pallas import tpu as pltpu


def _make_dice_kernel(R, cps, n_valid, need_mask):
    """Kernel factory with static chunk geometry baked in.

    R        : rows (of 128 lanes) per chunk block.
    cps      : chunks per split (innermost grid extent).
    n_valid  : true number of elements per sample (C*H*W).
    need_mask: True if any chunk can see padded / out-of-bounds elements.
    """

    def _lanewise_partial(x):
        # (R, 128) f32 -> (8, 128) f32 partial sums.  Hot path (R % 8 == 0) is
        # pure vreg-wise VPU adds; cross-sublane/lane reduction is deferred to
        # the wrapper.
        if R % 8 == 0:
            return x.reshape(R // 8, 8, 128).sum(axis=0)
        s = jnp.sum(x, axis=0, keepdims=True)                      # (1, 128)
        row = lax.broadcasted_iota(jnp.int32, (8, 128), 0)
        return jnp.where(row == 0, jnp.broadcast_to(s, (8, 128)), 0.0)

    def kernel(p_ref, t_ref, o_ref):
        s = pl.program_id(1)
        c = pl.program_id(2)

        @pl.when(c == 0)
        def _():
            o_ref[...] = jnp.zeros_like(o_ref)

        # sigmoid(x) = 0.5*tanh(0.5*x) + 0.5  -> single EUP push, exact.
        p32 = p_ref[...].astype(jnp.float32)                       # (R, 128)
        pf = 0.5 * jnp.tanh(0.5 * p32) + 0.5
        tf = t_ref[...].astype(jnp.float32)

        if need_mask:
            # Zero out lane-pad / out-of-bounds rows of the ragged tail chunk.
            start_row = (s * cps + c) * R
            ri = lax.broadcasted_iota(jnp.int32, (R, 128), 0)
            li = lax.broadcasted_iota(jnp.int32, (R, 128), 1)
            valid = (start_row + ri) * 128 + li < n_valid
            pf = jnp.where(valid, pf, 0.0)
            tf = jnp.where(valid, tf, 0.0)

        o_ref[0] += _lanewise_partial(pf * tf)     # intersection partials
        o_ref[1] += _lanewise_partial(pf + tf)     # fused pred.sum()+target.sum()

    return kernel


def dice_loss(preds, targets, *, chunk_rows=4096):
    """Pallas implementation of DiceLoss.forward(preds, targets).

    preds  : (B, C, H, W) float array (bf16 recommended — kernel is HBM-bound).
    targets: (B, C, H, W) binary mask (int8/uint8 recommended).
    Returns a scalar float32 loss identical to the PyTorch module.
    """
    assert preds.shape == targets.shape
    B = preds.shape[0]
    N = 1
    for d in preds.shape[1:]:
        N *= int(d)

    # Keep the chunk a multiple of 32 rows so int8 targets satisfy (32, 128)
    # tiling and the in-kernel (R//8, 8, 128) reshape is exact.
    chunk_rows = max(32, (chunk_rows // 32) * 32)

    rows = pl.cdiv(N, 128)
    lane_pad = rows * 128 - N

    p_flat = preds.reshape(B, N)
    t_flat = targets.reshape(B, N)
    if lane_pad:
        # Rare path (C*H*W not a multiple of 128): pad by < 128 elements per
        # sample with zeros purely so the (B, rows, 128) reshape is legal; the
        # kernel masks these by element index, so the pad value / input dtype
        # is irrelevant.  (Common case N % 128 == 0 does zero extra HBM work.)
        p_flat = jnp.pad(p_flat, ((0, 0), (0, lane_pad)))
        t_flat = jnp.pad(t_flat, ((0, 0), (0, lane_pad)))
    p_r = p_flat.reshape(B, rows, 128)
    t_r = t_flat.reshape(B, rows, 128)

    # Chunk geometry: R rows of 128 lanes per grid step.
    if rows <= chunk_rows:
        R = rows
        n_chunks = 1
    else:
        n_target = pl.cdiv(rows, chunk_rows)
        R = ((pl.cdiv(rows, n_target) + 31) // 32) * 32
        n_chunks = pl.cdiv(rows, R)

    # Split each sample's chunk range over a second parallel axis when the
    # batch alone can't keep both v7x TensorCores busy (B == 1 / odd B).
    n_split = 2 if (n_chunks >= 2 and B % 2 == 1) else 1
    cps = pl.cdiv(n_chunks, n_split)
    last_blk = n_chunks - 1

    # Mask only if the streamed coverage exceeds the true element count.
    need_mask = (n_split * cps * R * 128) != N

    if n_split * cps == n_chunks:
        def in_map(b, s, c):
            return (b, s * cps + c, 0)
    else:
        def in_map(b, s, c):
            # Clamp an overhanging chunk slot onto a valid block; its
            # contribution is zeroed by the in-kernel element-index mask.
            return (b, jnp.minimum(s * cps + c, last_blk), 0)

    kernel = _make_dice_kernel(R, cps, N, need_mask)

    # VMEM budget: 2x double-buffered input blocks + f32 elementwise temps.
    blk_bytes = R * 128 * (p_r.dtype.itemsize + t_r.dtype.itemsize)
    vmem_limit = int(max(32 * 2**20, 2 * blk_bytes + 6 * R * 128 * 4 + (1 << 20)))

    out = pl.pallas_call(
        kernel,
        out_shape=jax.ShapeDtypeStruct((B, n_split, 2, 8, 128), jnp.float32),
        grid_spec=pltpu.PrefetchScalarGridSpec(
            num_scalar_prefetch=0,
            grid=(B, n_split, cps),
            in_specs=[
                pl.BlockSpec((None, R, 128), in_map),
                pl.BlockSpec((None, R, 128), in_map),
            ],
            out_specs=pl.BlockSpec((None, None, 2, 8, 128),
                                   lambda b, s, c: (b, s, 0, 0, 0)),
        ),
        compiler_params=pltpu.CompilerParams(
            dimension_semantics=("parallel", "parallel", "arbitrary"),
            vmem_limit_bytes=vmem_limit,
        ),
    )(p_r, t_r)

    # Tiny finalization in XLA: cross-lane reduce + dice formula + batch mean.
    inter = out[:, :, 0].sum(axis=(1, 2, 3))            # (B,)
    denom = out[:, :, 1].sum(axis=(1, 2, 3))            # (B,)
    smooth = jnp.float32(1.0)
    dice = (2.0 * inter + smooth) / (denom + smooth)
    return jnp.mean(1.0 - dice)


def _dice_loss_ref(preds, targets):
    # Pure-JAX reference matching the PyTorch module exactly.
    p = jax.nn.sigmoid(preds.astype(jnp.float32))
    t = targets.astype(jnp.float32)
    smooth = 1.0
    loss = 0.0
    B = preds.shape[0]
    for i in range(B):
        inter = jnp.sum(p[i] * t[i])
        dice = (2.0 * inter + smooth) / (jnp.sum(p[i]) + jnp.sum(t[i]) + smooth)
        loss += 1.0 - dice
    return loss / B


if __name__ == "__main__":
    key = jax.random.PRNGKey(0)
    k1, k2, k3, k4 = jax.random.split(key, 4)

    # --- Case 1: module-sized input (B, C, H, W) = (2, 4, 16, 16) ------------
    B, C, H, W = 2, 4, 16, 16
    preds = jax.random.normal(k1, (B, C, H, W), dtype=jnp.float32).astype(jnp.bfloat16)
    targets = (jax.random.uniform(k2, (B, C, H, W)) > 0.5).astype(jnp.bfloat16)

    loss = dice_loss(preds, targets)
    jax.block_until_ready(loss)
    ref = _dice_loss_ref(preds, targets)
    assert jnp.allclose(loss, ref, rtol=5e-4, atol=5e-4), (loss, ref)

    # --- Case 2: odd batch, N not a multiple of 128, multi-chunk + split path,
    #             int8 binary targets (3 bytes/element pair). ------------------
    B2, C2, H2, W2 = 1, 3, 200, 200          # N = 120000
    preds2 = jax.random.normal(k3, (B2, C2, H2, W2), dtype=jnp.float32).astype(jnp.bfloat16)
    targets2 = (jax.random.uniform(k4, (B2, C2, H2, W2)) > 0.5).astype(jnp.int8)

    loss2 = dice_loss(preds2, targets2, chunk_rows=256)
    jax.block_until_ready(loss2)
    ref2 = _dice_loss_ref(preds2, targets2)
    assert jnp.allclose(loss2, ref2, rtol=5e-4, atol=5e-4), (loss2, ref2)

    print("KERNEL_OK")
</pallas_src>

<mosaic_0001>
module attributes {stable_mosaic.version = 11 : i64} {
  func.func @kernel(%arg0: i32, %arg1: i32, %arg2: i32, %arg3: memref<1x8x128xbf16, #tpu.memory_space<vmem>>, %arg4: memref<1x8x128xbf16, #tpu.memory_space<vmem>>, %arg5: memref<1x1x2x8x128xf32, #tpu.memory_space<vmem>>) attributes {dimension_semantics = [#tpu.dimension_semantics<parallel>, #tpu.dimension_semantics<parallel>, #tpu.dimension_semantics<arbitrary>], iteration_bounds = array<i64: 2, 1, 1>, scalar_prefetch = 0 : i64, scratch_operands = 0 : i64, tpu.core_type = #tpu.core_type<tc>, window_params = [{transform_indices = @transform_0, window_bounds = array<i64: 1, 8, 128>}, {transform_indices = @transform_1, window_bounds = array<i64: 1, 8, 128>}, {transform_indices = @transform_2, window_bounds = array<i64: 1, 1, 2, 8, 128>}]} {
    %c0_i32 = arith.constant 0 : i32
    %0 = arith.cmpi eq, %arg2, %c0_i32 : i32
    %1 = arith.extui %0 : i1 to i32
    %c0_i32_0 = arith.constant 0 : i32
    %2 = arith.cmpi ne, %1, %c0_i32_0 : i32
    scf.if %2 {
      %cst_29 = arith.constant 0.000000e+00 : f32
      %34 = vector.broadcast %cst_29 : f32 to vector<2x8x128xf32>
      %c0_30 = arith.constant 0 : index
      %c0_31 = arith.constant 0 : index
      %c0_32 = arith.constant 0 : index
      %c0_33 = arith.constant 0 : index
      %c0_34 = arith.constant 0 : index
      %35 = vector.load %arg5[%c0_30, %c0_31, %c0_32, %c0_33, %c0_34] : memref<1x1x2x8x128xf32, #tpu.memory_space<vmem>>, vector<1x1x2x8x128xf32>
      %36 = vector.shape_cast %35 : vector<1x1x2x8x128xf32> to vector<2x8x128xf32>
      %37 = vector.shape_cast %34 : vector<2x8x128xf32> to vector<1x1x2x8x128xf32>
      tpu.vector_store %arg5[%c0_30, %c0_31, %c0_32, %c0_33, %c0_34], %37 {strides = array<i32>} : memref<1x1x2x8x128xf32, #tpu.memory_space<vmem>>, vector<1x1x2x8x128xf32>,
    } else {
    }
    %c0 = arith.constant 0 : index
    %c0_1 = arith.constant 0 : index
    %c0_2 = arith.constant 0 : index
    %3 = vector.load %arg3[%c0, %c0_1, %c0_2] : memref<1x8x128xbf16, #tpu.memory_space<vmem>>, vector<1x8x128xbf16>
    %4 = vector.shape_cast %3 : vector<1x8x128xbf16> to vector<8x128xbf16>
    %5 = arith.extf %4 : vector<8x128xbf16> to vector<8x128xf32>
    %cst = arith.constant 5.000000e-01 : f32
    %6 = vector.broadcast %cst : f32 to vector<8x128xf32>
    %7 = arith.mulf %6, %5 : vector<8x128xf32>
    %8 = math.tanh %7 : vector<8x128xf32>
    %cst_3 = arith.constant 5.000000e-01 : f32
    %9 = vector.broadcast %cst_3 : f32 to vector<8x128xf32>
    %10 = arith.mulf %9, %8 : vector<8x128xf32>
    %cst_4 = arith.constant 5.000000e-01 : f32
    %11 = vector.broadcast %cst_4 : f32 to vector<8x128xf32>
    %12 = arith.addf %10, %11 : vector<8x128xf32>
    %c0_5 = arith.constant 0 : index
    %c0_6 = arith.constant 0 : index
    %c0_7 = arith.constant 0 : index
    %13 = vector.load %arg4[%c0_5, %c0_6, %c0_7] : memref<1x8x128xbf16, #tpu.memory_space<vmem>>, vector<1x8x128xbf16>
    %14 = vector.shape_cast %13 : vector<1x8x128xbf16> to vector<8x128xbf16>
    %15 = arith.extf %14 : vector<8x128xbf16> to vector<8x128xf32>
    %c0_8 = arith.constant 0 : index
    %c0_9 = arith.constant 0 : index
    %c0_10 = arith.constant 0 : index
    %c0_11 = arith.constant 0 : index
    %c0_12 = arith.constant 0 : index
    %16 = vector.load %arg5[%c0_8, %c0_9, %c0_10, %c0_11, %c0_12] : memref<1x1x2x8x128xf32, #tpu.memory_space<vmem>>, vector<1x1x1x8x128xf32>
    %17 = vector.shape_cast %16 : vector<1x1x1x8x128xf32> to vector<8x128xf32>
    %18 = arith.mulf %12, %15 : vector<8x128xf32>
    %19 = vector.shape_cast %18 : vector<8x128xf32> to vector<1x8x128xf32>
    %cst_13 = arith.constant dense<0.000000e+00> : vector<8x128xf32>
    %20 = vector.multi_reduction <add>, %19, %cst_13 [0] : vector<1x8x128xf32> to vector<8x128xf32>
    %21 = arith.addf %17, %20 : vector<8x128xf32>
    %c0_14 = arith.constant 0 : index
    %c0_15 = arith.constant 0 : index
    %c0_16 = arith.constant 0 : index
    %c0_17 = arith.constant 0 : index
    %c0_18 = arith.constant 0 : index
    %22 = vector.load %arg5[%c0_14, %c0_15, %c0_16, %c0_17, %c0_18] : memref<1x1x2x8x128xf32, #tpu.memory_space<vmem>>, vector<1x1x1x8x128xf32>
    %23 = vector.shape_cast %22 : vector<1x1x1x8x128xf32> to vector<8x128xf32>
    %24 = vector.shape_cast %21 : vector<8x128xf32> to vector<1x1x1x8x128xf32>
    tpu.vector_store %arg5[%c0_14, %c0_15, %c0_16, %c0_17, %c0_18], %24 {strides = array<i32>} : memref<1x1x2x8x128xf32, #tpu.memory_space<vmem>>, vector<1x1x1x8x128xf32>,
    %c0_19 = arith.constant 0 : index
    %c0_20 = arith.constant 0 : index
    %c1 = arith.constant 1 : index
    %c0_21 = arith.constant 0 : index
    %c0_22 = arith.constant 0 : index
    %25 = vector.load %arg5[%c0_19, %c0_20, %c1, %c0_21, %c0_22] : memref<1x1x2x8x128xf32, #tpu.memory_space<vmem>>, vector<1x1x1x8x128xf32>
    %26 = vector.shape_cast %25 : vector<1x1x1x8x128xf32> to vector<8x128xf32>
    %27 = arith.addf %12, %15 : vector<8x128xf32>
    %28 = vector.shape_cast %27 : vector<8x128xf32> to vector<1x8x128xf32>
    %cst_23 = arith.constant dense<0.000000e+00> : vector<8x128xf32>
    %29 = vector.multi_reduction <add>, %28, %cst_23 [0] : vector<1x8x128xf32> to vector<8x128xf32>
    %30 = arith.addf %26, %29 : vector<8x128xf32>
    %c0_24 = arith.constant 0 : index
    %c0_25 = arith.constant 0 : index
    %c1_26 = arith.constant 1 : index
    %c0_27 = arith.constant 0 : index
    %c0_28 = arith.constant 0 : index
    %31 = vector.load %arg5[%c0_24, %c0_25, %c1_26, %c0_27, %c0_28] : memref<1x1x2x8x128xf32, #tpu.memory_space<vmem>>, vector<1x1x1x8x128xf32>
    %32 = vector.shape_cast %31 : vector<1x1x1x8x128xf32> to vector<8x128xf32>
    %33 = vector.shape_cast %30 : vector<8x128xf32> to vector<1x1x1x8x128xf32>
    tpu.vector_store %arg5[%c0_24, %c0_25, %c1_26, %c0_27, %c0_28], %33 {strides = array<i32>} : memref<1x1x2x8x128xf32, #tpu.memory_space<vmem>>, vector<1x1x1x8x128xf32>,
    return
  }
  func.func @transform_0(%arg0: i32, %arg1: i32, %arg2: i32) -> (i32, i32, i32) {
    %c1_i32 = arith.constant 1 : i32
    %0 = arith.muli %arg1, %c1_i32 : i32
    %1 = arith.addi %0, %arg2 : i32
    %c0_i32 = arith.constant 0 : i32
    %c0_i32_0 = arith.constant 0 : i32
    return %arg0, %1, %c0_i32 : i32, i32, i32
  }
  func.func @transform_1(%arg0: i32, %arg1: i32, %arg2: i32) -> (i32, i32, i32) {
    %c1_i32 = arith.constant 1 : i32
    %0 = arith.muli %arg1, %c1_i32 : i32
    %1 = arith.addi %0, %arg2 : i32
    %c0_i32 = arith.constant 0 : i32
    %c0_i32_0 = arith.constant 0 : i32
    return %arg0, %1, %c0_i32 : i32, i32, i32
  }
  func.func @transform_2(%arg0: i32, %arg1: i32, %arg2: i32) -> (i32, i32, i32, i32, i32) {
    %c0_i32 = arith.constant 0 : i32
    %c0_i32_0 = arith.constant 0 : i32
    %c0_i32_1 = arith.constant 0 : i32
    %c0_i32_2 = arith.constant 0 : i32
    return %arg0, %arg1, %c0_i32, %c0_i32_0, %c0_i32_1 : i32, i32, i32, i32, i32
  }
}

</mosaic_0001>

<llo_original>
// kernel: tpu_custom_call.1
$region0: #{tpu_custom_call.1}
  #allocation0 [shape = 'u32[]', space=smem, size = 0x4, offset = 0x4, fixed_abs, tag = 'smem constant byte address 0x4 - core index']
  #allocation1 [shape = 'u32[144,128]{1,0:T(1,128)}', space=vmem, size = 0x12000, scoped, tag = 'internal scratch']
  %s0 = inlined_call_operand.hbm [shape: bf16[2,8,128], index: 0, kind: input, shape index: {}]
  %s1 = inlined_call_operand.hbm [shape: bf16[2,8,128], index: 1, kind: input, shape index: {}]
  %s2 = inlined_call_operand.hbm [shape: f32[2,1,2,8,128], index: 2, kind: output, shape index: {}]
  %s3 = sld [smem:[#allocation0]]
  $region53: #{tpu_custom_call.1} parent=0
    _
  %s5 = ssub.s32 1, %s3
  %s6 = scalar_select 0, %s5, %s3
  $region1: #{tpu_custom_call.1} parent=0
    #allocation2 [shape = 'u8[4096]{0}', space=vmem, size = 0x1000, scoped, tag = 'input window, operand 0']
    #allocation3 [shape = 's32[2]{0}', space=sflag, size = 0x8, scoped, tag = 'scoped memory for tpu_custom_call.1']
    #allocation4 [shape = 's32[2]{0}', space=sflag, size = 0x8, scoped, tag = 'scoped memory for tpu_custom_call.1']
    #allocation5 [shape = 'u8[4096]{0}', space=vmem, size = 0x1000, scoped, tag = 'input window, operand 1']
    #allocation6 [shape = 's32[2]{0}', space=sflag, size = 0x8, scoped, tag = 'scoped memory for tpu_custom_call.1']
    #allocation7 [shape = 'u8[16384]{0}', space=vmem, size = 0x4000, scoped, tag = 'output window, operand 0']
    %7 = vsyncpa [#allocation3], 0
    %s8 = scalar_lea.sflag [#allocation3], 1
    %9 = vsyncpa %s8, 0
    %10 = vsyncpa [#allocation6], 0
    %s11 = scalar_lea.sflag [#allocation6], 1
    %12 = vsyncpa %s11, 0
    %13 = vsyncpa [#allocation4], 0
    %s14 = scalar_lea.sflag [#allocation4], 1
    %15 = vsyncpa %s14, 0
    loop: start=0, step=1, limit=4
    $region2: #{tpu_custom_call.1} parent=1 // loop_pre_header
      _
    $region3: #{tpu_custom_call.1} parent=1 // loop_header
      %s17 = sphi 0, %s21
      %p18 = scmp.ge.s32.totalorder %s17, 4
      %s24 = sphi 0, %s43
      %s25 = sphi 0, %s39
      %s26 = sphi 0, %s35
      %s27 = sphi 0, %s24
      %s28 = sphi 0, %s25
      %s29 = sphi 0, %s26
      %s30 = sphi 0, %s27
      %s31 = sphi 0, %s28
      %s32 = sphi 0, %s29
      %s50 = sphi 0, %s52
      %s53 = sphi 0, %s50
      %s54 = sphi 0, %s53
      %s70 = sphi 0, %s54
      %s80 = sphi 0, %s82
      %s83 = sphi 0, %s80
      %s84 = sphi 0, %s83
      %s100 = sphi 0, %s84
      %s108 = sphi 0, %s110
      %s111 = sphi 0, %s108
      %s112 = sphi 0, %s111
      %s128 = sphi 0, %s112
    $region4: #{tpu_custom_call.1} parent=1 // loop_header_branch
      %20 = sbr.rel (%p18) target = $region8
    $region5: #{tpu_custom_call.1} parent=1 // loop_body
      %s22 = ssub.s32 %s17, 1
      %s23 = ssub.s32 %s17, 2
      %s33 = sadd.s32 1, %s26
      %p34 = scmp.ge.s32.totalorder %s33, 1
      %s35 = scalar_select %p34, 0, %s33
      %s36 = sadd.s32 1, %s25
      %s37 = scalar_select %p34, %s36, %s25
      %p38 = scmp.ge.s32.totalorder %s37, 1
      %s39 = scalar_select %p38, 0, %s37
      %s40 = sadd.s32 1, %s24
      %s41 = scalar_select %p38, %s40, %s24
      %p42 = scmp.ge.s32.totalorder %s41, 2
      %s43 = scalar_select %p42, 0, %s41
      %s44 = sadd.s32 %s25, %s26
      %s45 = sadd.s32 %s39, %s35
      %s46 = ssub.s32 %s24, %s43
      %s47 = ssub.s32 %s44, %s45
      %s48 = sor.u32 %s46, %s47
      %p49 = scmp.eq.s32.totalorder %s48, 0
      %s51 = sadd.s32 %s50, 1
      %s52 = scalar_select %p49, %s50, %s51
      %p55 = pneg %p49
      %p56 = scmp.eq.s32.totalorder %s17, 1
      %p57 = por %p55, %p56
      %p58 = scmp.ne.s32.totalorder %s50, %s53
      %p59 = scmp.eq.s32.totalorder %s17, 0
      %p60 = por %p58, %p59
      %p61 = scmp.ne.s32.totalorder %s50, %s53
      %p62 = scmp.eq.s32.totalorder %s22, 1
      %p63 = por %p61, %p62
      %p64 = scmp.ne.s32.totalorder %s53, %s54
      %p65 = scmp.eq.s32.totalorder %s22, 0
      %p66 = por %p64, %p65
      %p67 = scmp.ne.s32.totalorder %s53, %s54
      %p68 = scmp.eq.s32.totalorder %s23, 1
      %p69 = por %p67, %p68
      %p71 = scmp.ne.s32.totalorder %s54, %s70
      %p72 = scmp.eq.s32.totalorder %s23, 0
      %p73 = por %p71, %p72
      %s74 = sadd.s32 %s25, %s26
      %s75 = sadd.s32 %s39, %s35
      %s76 = ssub.s32 %s24, %s43
      %s77 = ssub.s32 %s74, %s75
      %s78 = sor.u32 %s76, %s77
      %p79 = scmp.eq.s32.totalorder %s78, 0
      %s81 = sadd.s32 %s80, 1
      %s82 = scalar_select %p79, %s80, %s81
      %p85 = pneg %p79
      %p86 = scmp.eq.s32.totalorder %s17, 1
      %p87 = por %p85, %p86
      %p88 = scmp.ne.s32.totalorder %s80, %s83
      %p89 = scmp.eq.s32.totalorder %s17, 0
      %p90 = por %p88, %p89
      %p91 = scmp.ne.s32.totalorder %s80, %s83
      %p92 = scmp.eq.s32.totalorder %s22, 1
      %p93 = por %p91, %p92
      %p94 = scmp.ne.s32.totalorder %s83, %s84
      %p95 = scmp.eq.s32.totalorder %s22, 0
      %p96 = por %p94, %p95
      %p97 = scmp.ne.s32.totalorder %s83, %s84
      %p98 = scmp.eq.s32.totalorder %s23, 1
      %p99 = por %p97, %p98
      %p101 = scmp.ne.s32.totalorder %s84, %s100
      %p102 = scmp.eq.s32.totalorder %s23, 0
      %p103 = por %p101, %p102
      %s104 = ssub.s32 %s24, %s43
      %s105 = ssub.s32 %s25, %s39
      %s106 = sor.u32 %s104, %s105
      %p107 = scmp.eq.s32.totalorder %s106, 0
      %s109 = sadd.s32 %s108, 1
      %s110 = scalar_select %p107, %s108, %s109
      %p113 = pneg %p107
      %p114 = scmp.eq.s32.totalorder %s17, 1
      %p115 = por %p113, %p114
      %p116 = scmp.ne.s32.totalorder %s108, %s111
      %p117 = scmp.eq.s32.totalorder %s17, 0
      %p118 = por %p116, %p117
      %p119 = scmp.ne.s32.totalorder %s108, %s111
      %p120 = scmp.eq.s32.totalorder %s22, 1
      %p121 = por %p119, %p120
      %p122 = scmp.ne.s32.totalorder %s111, %s112
      %p123 = scmp.eq.s32.totalorder %s22, 0
      %p124 = por %p122, %p123
      %p125 = scmp.ne.s32.totalorder %s111, %s112
      %p126 = scmp.eq.s32.totalorder %s23, 1
      %p127 = por %p125, %p126
      %p129 = scmp.ne.s32.totalorder %s112, %s128
      %p130 = scmp.eq.s32.totalorder %s23, 0
      %p131 = por %p129, %p130
      %p132 = scmp.le.s32.totalorder 1, %s17
      %p133 = scmp.lt.s32.totalorder %s17, 3
      %p134 = pnand %p132, %p133
      %p135 = pneg %p134
      // Predicated region
      $region9: #{tpu_custom_call.1} parent=5 // pred_check
        _
      $region10: #{tpu_custom_call.1} parent=5 // pred_check_branch
        %137 = sbr.rel (%p134) target = $region12
      $region11: #{tpu_custom_call.1} parent=5 // pred_region
        %s138 = ssub.s32 %s17, 1
      $region12: #{tpu_custom_call.1} parent=5 // pred_fallthru
        _
      %p139 = scmp.lt.s32.totalorder %s17, 2
      // Predicated region
      $region13: #{tpu_custom_call.1} parent=5 // pred_check
        %p140 = pneg %p139
      $region14: #{tpu_custom_call.1} parent=5 // pred_check_branch
        %142 = sbr.rel (%p140) target = $region16
      $region15: #{tpu_custom_call.1} parent=5 // pred_region
        // Predicated region
        $region17: #{tpu_custom_call.1} parent=15 // pred_check
          %p143 = pneg %p60
        $region18: #{tpu_custom_call.1} parent=15 // pred_check_branch
          %145 = sbr.rel (%p143) target = $region20
        $region19: #{tpu_custom_call.1} parent=15 // pred_region
          %s146 = sand.u32 %s50, 1
          %s147 = scalar_lea.sflag [#allocation3], %s146
          %s148 = sand.u32 %s50, 1
          %s149 = smul.addr %s148, 4
          %s150 = scalar_lea.vmem [#allocation2], %s149
          %s151 = sadd.s32 %s25, %s26
          %s153 = ssub.s32 64, 64
          %154 = vsyncadd %s147, %s153
          %s155 = sadd.s32 %s151, %s24
          %s156 = smul.addr %s155, 64
          %s157 = scalar_lea.hbm %s0, %s156
          %s159 = sshll.u32 %s150, 4
          %s160 = int_to_ptr.vmem [resolvable:$true] %s159
          %162 = dma.hbm_to_vmem [thread:$0]  %s157, 64, %s160, %s147
        $region20: #{tpu_custom_call.1} parent=15 // pred_fallthru
          _
        // Predicated region
        $region21: #{tpu_custom_call.1} parent=15 // pred_check
          %p163 = pneg %p90
        $region22: #{tpu_custom_call.1} parent=15 // pred_check_branch
          %165 = sbr.rel (%p163) target = $region24
        $region23: #{tpu_custom_call.1} parent=15 // pred_region
          %s166 = sand.u32 %s80, 1
          %s167 = scalar_lea.sflag [#allocation6], %s166
          %s168 = sand.u32 %s80, 1
          %s169 = smul.addr %s168, 4
          %s170 = scalar_lea.vmem [#allocation5], %s169
          %s171 = sadd.s32 %s25, %s26
          %s173 = ssub.s32 64, 64
          %174 = vsyncadd %s167, %s173
          %s175 = sadd.s32 %s171, %s24
          %s176 = smul.addr %s175, 64
          %s177 = scalar_lea.hbm %s1, %s176
          %s179 = sshll.u32 %s170, 4
          %s180 = int_to_ptr.vmem [resolvable:$true] %s179
          %182 = dma.hbm_to_vmem [thread:$0]  %s177, 64, %s180, %s167
        $region24: #{tpu_custom_call.1} parent=15 // pred_fallthru
          _
      $region16: #{tpu_custom_call.1} parent=5 // pred_fallthru
        _
      %p183 = scmp.le.s32.totalorder 1, %s17
      %p184 = scmp.lt.s32.totalorder %s17, 3
      %p185 = pnand %p183, %p184
      %p186 = pneg %p185
      // Predicated region
      $region25: #{tpu_custom_call.1} parent=5 // pred_check
        _
      $region26: #{tpu_custom_call.1} parent=5 // pred_check_branch
        %188 = sbr.rel (%p185) target = $region28
      $region27: #{tpu_custom_call.1} parent=5 // pred_region
        %s189 = ssub.s32 %s17, 1
        %s190 = sand.u32 %s53, 1
        %s191 = scalar_lea.sflag [#allocation3], %s190
        %s192 = sand.u32 %s53, 1
        %s193 = smul.addr %s192, 4
        %s194 = scalar_lea.vmem [#allocation2], %s193
        // Predicated region
        $region29: #{tpu_custom_call.1} parent=27 // pred_check
          %p195 = pneg %p66
        $region30: #{tpu_custom_call.1} parent=27 // pred_check_branch
          %197 = sbr.rel (%p195) target = $region32
        $region31: #{tpu_custom_call.1} parent=27 // pred_region
          %198 = dma.done %s191, 64
        $region32: #{tpu_custom_call.1} parent=27 // pred_fallthru
          _
        %s199 = sand.u32 %s83, 1
        %s200 = scalar_lea.sflag [#allocation6], %s199
        %s201 = sand.u32 %s83, 1
        %s202 = smul.addr %s201, 4
        %s203 = scalar_lea.vmem [#allocation5], %s202
        // Predicated region
        $region33: #{tpu_custom_call.1} parent=27 // pred_check
          %p204 = pneg %p96
        $region34: #{tpu_custom_call.1} parent=27 // pred_check_branch
          %206 = sbr.rel (%p204) target = $region36
        $region35: #{tpu_custom_call.1} parent=27 // pred_region
          %207 = dma.done %s200, 64
        $region36: #{tpu_custom_call.1} parent=27 // pred_fallthru
          _
        %s208 = sand.u32 %s53, 1
        %s209 = scalar_lea.sflag [#allocation3], %s208
        %s210 = sand.u32 %s53, 1
        %s211 = smul.addr %s210, 4
        %s212 = scalar_lea.vmem [#allocation2], %s211
        %p213 = pneg %p66
        %p214 = pneg %p63
        %s215 = sand.u32 %s83, 1
        %s216 = scalar_lea.sflag [#allocation6], %s215
        %s217 = sand.u32 %s83, 1
        %s218 = smul.addr %s217, 4
        %s219 = scalar_lea.vmem [#allocation5], %s218
        %p220 = pneg %p96
        %p221 = pneg %p93
        %p222 = pneg %p124
        %p223 = pneg %p121
        %s224 = sand.u32 %s111, 1
        %s225 = scalar_lea.sflag [#allocation4], %s224
        %s226 = sand.u32 %s111, 1
        %s227 = smul.addr %s226, 16
        %s228 = scalar_lea.vmem [#allocation7], %s227
        %s229 = sadd.s32 %s28, %s29
        %s230 = sadd.s32 %s28, %s29
        %p231 = scmp.eq.s32.totalorder %s29, 0
        // Predicated region
        $region37: #{tpu_custom_call.1} parent=27 // pred_check
          %p232 = pneg %p231
        $region38: #{tpu_custom_call.1} parent=27 // pred_check_branch
          %234 = sbr.rel (%p232) target = $region40
        $region39: #{tpu_custom_call.1} parent=27 // pred_region
          %235 = vst [vmem:[%s228] sm:$0xff] 0.0
          %236 = vst [vmem:[%s228 + $0x8] sm:$0xff] 0.0
        $region40: #{tpu_custom_call.1} parent=27 // pred_fallthru
          _
        %v237 = vld [vmem:[%s194] sm:$0xf]
        %v238 = vunpack.c.l.bf16 %v237
        %v239 = vmul.f32 %v238, 0.5
        %v240 = vtanh.pop %v239
        %v241 = vmul.f32 %v240, 0.5
        %v242 = vadd.f32 %v241, 0.5
        %v243 = vld [vmem:[%s203] sm:$0xf]
        %v244 = vunpack.c.l.bf16 %v243
        %v245 = vld [vmem:[%s228] sm:$0xff]
        %v246 = vmul.f32 %v242, %v244
        %v247 = vadd.f32 %v246, 0.0
        %v248 = vadd.f32 %v245, %v247
        %249 = vst [vmem:[%s228] sm:$0xff] %v248
        %s250 = scalar_lea.vmem %s228, 8 [#allocation7]
        %v251 = vld [vmem:[%s250] sm:$0xff]
        %v252 = vadd.f32 %v242, %v244
        %v253 = vadd.f32 %v252, 0.0
        %v254 = vadd.f32 %v251, %v253
        %255 = vst [vmem:[%s250] sm:$0xff] %v254
        %s256 = sand.u32 %s111, 1
        %s257 = scalar_lea.sflag [#allocation4], %s256
        %s258 = sand.u32 %s111, 1
        %s259 = smul.addr %s258, 16
        %s260 = scalar_lea.vmem [#allocation7], %s259
        // Predicated region
        $region41: #{tpu_custom_call.1} parent=27 // pred_check
          %p261 = pneg %p121
        $region42: #{tpu_custom_call.1} parent=27 // pred_check_branch
          %263 = sbr.rel (%p261) target = $region44
        $region43: #{tpu_custom_call.1} parent=27 // pred_region
          %s265 = ssub.s32 256, 256
          %266 = vsyncadd %s257, %s265
          %s267 = smul.addr %s28, 2
          %s268 = smul.addr %s27, 2
          %s269 = sadd.s32 %s267, %s268
          %s270 = smul.addr %s269, 128
          %s271 = scalar_lea.hbm %s2, %s270
          %s272 = sshll.u32 %s260, 4
          %s273 = int_to_ptr.vmem [resolvable:$true] %s272
          %278 = dma.vmem_to_hbm [thread:$0]  %s273, 256, %s271, %s257, 128, 128, 8
        $region44: #{tpu_custom_call.1} parent=27 // pred_fallthru
          _
      $region28: #{tpu_custom_call.1} parent=5 // pred_fallthru
        _
      %p279 = scmp.le.s32.totalorder 2, %s17
      // Predicated region
      $region45: #{tpu_custom_call.1} parent=5 // pred_check
        %p280 = pneg %p279
      $region46: #{tpu_custom_call.1} parent=5 // pred_check_branch
        %282 = sbr.rel (%p280) target = $region48
      $region47: #{tpu_custom_call.1} parent=5 // pred_region
        %s283 = ssub.s32 %s17, 2
        // Predicated region
        $region49: #{tpu_custom_call.1} parent=47 // pred_check
          %p284 = pneg %p127
        $region50: #{tpu_custom_call.1} parent=47 // pred_check_branch
          %286 = sbr.rel (%p284) target = $region52
        $region51: #{tpu_custom_call.1} parent=47 // pred_region
          %s287 = sand.u32 %s112, 1
          %s288 = scalar_lea.sflag [#allocation4], %s287
          %s289 = sand.u32 %s112, 1
          %s290 = smul.addr %s289, 16
          %s291 = scalar_lea.vmem [#allocation7], %s290
          %292 = dma.done %s288, 256
        $region52: #{tpu_custom_call.1} parent=47 // pred_fallthru
          _
      $region48: #{tpu_custom_call.1} parent=5 // pred_fallthru
        _
    $region6: #{tpu_custom_call.1} parent=1 // loop_footer
      %s21 = sadd.s32 1, %s17
    $region7: #{tpu_custom_call.1} parent=1 // loop_footer_branch
      %16 = sbr.rel target = $region3
    $region8: #{tpu_custom_call.1} parent=1 // loop_exit
      _
    %293 = vsyncpa [#allocation3], 1
    %s294 = scalar_lea.sflag [#allocation3], 1
    %295 = vsyncpa %s294, 1
    %296 = vsyncpa [#allocation6], 1
    %s297 = scalar_lea.sflag [#allocation6], 1
    %298 = vsyncpa %s297, 1
    %299 = vsyncpa [#allocation4], 1
    %s300 = scalar_lea.sflag [#allocation4], 1
    %301 = vsyncpa %s300, 1

</llo_original>
